<compile_context>
chip_gen: v7x
topology: tpu7x:2x2x1
jax: 0.10.0
libtpu: 0.0.40
codegen_flags: <defaults>
</compile_context>

<pallas_src>
import jax
import jax.numpy as jnp
from jax import lax
from jax.experimental import pallas as pl
from jax.experimental.pallas import tpu as pltpu


def _contrastive_kernel(s1_ref, s2_ref, t1_ref, t2_ref, acc_ref):
    """One grid step: (tile_b, C, tile_hw) slabs of the four inputs.

    acc_ref is the (tile_b, 1, tile_hw) output block for this (batch-block,
    hw_outer) pair, resident across the innermost hw grid axis; it accumulates
    per-pixel cos(student, teacher) for both augmentation pairs.
    """
    hi = pl.program_id(2)

    @pl.when(hi == 0)
    def _init():
        acc_ref[...] = jnp.zeros_like(acc_ref)

    def pair_cos(s_ref, t_ref):
        s = s_ref[...].astype(jnp.float32)                    # (tile_b, C, tile_hw)
        t = t_ref[...].astype(jnp.float32)
        dot = jnp.sum(s * t, axis=1, keepdims=True)           # (tile_b, 1, tile_hw)
        ss = jnp.sum(s * s, axis=1, keepdims=True)
        tt = jnp.sum(t * t, axis=1, keepdims=True)
        # F.normalize semantics: clamp each norm at 1e-12; rsqrt(max(x,1e-24))
        # is the identical clamp, done on the EUP with no divide.
        inv_s = lax.rsqrt(jnp.maximum(ss, 1e-24))
        inv_t = lax.rsqrt(jnp.maximum(tt, 1e-24))
        return dot * inv_s * inv_t                            # (tile_b, 1, tile_hw)

    acc_ref[...] += pair_cos(s1_ref, t1_ref) + pair_cos(s2_ref, t2_ref)


def _vmem_plan():
    """(working_set_budget_bytes, vmem_limit_bytes), generation-aware."""
    try:
        cap = int(pltpu.get_tpu_info().vmem_capacity_bytes)
    except Exception:
        cap = 64 << 20            # conservative fallback: v7x physical VMEM / TC
    work = max(8 << 20, min(cap // 2, 32 << 20))
    limit = min(cap, work + (16 << 20))
    return work, limit


def _pick_tile_hw(hw, c, itemsize, work_budget):
    """Lane tile for the HW axis (multiple of 128).

    Double-buffered input working set ~= 4 inputs x 2 bufs x C x tile_hw x
    itemsize (at tile_b = 1).  The wrapper zero-pads HW to a multiple of the
    returned tile.
    """
    lane_floor = 1024 if itemsize < 4 else 512     # >= 2 KiB contiguous DMA runs
    per_lane = 4 * 2 * c * itemsize
    cap = max(128, (work_budget // per_lane) // 128 * 128)
    hw128 = pl.cdiv(hw, 128) * 128
    if hw128 <= cap:
        return hw128                               # whole (128-padded) extent per block
    # Prefer a budget-sized divisor of hw128 (zero padding waste) ...
    tile = cap
    while tile > 128 and hw128 % tile:
        tile -= 128
    if tile >= min(lane_floor, cap):
        return tile
    # ... otherwise split into cdiv(hw128, cap) near-equal 128-aligned tiles
    # and let the wrapper zero-pad HW (waste < 128 lanes per tile).
    n_tiles = pl.cdiv(hw128, cap)
    return pl.cdiv(hw128 // 128, n_tiles) * 128


def _pick_tile_b(b, c, tile_hw, itemsize, work_budget):
    """Fold batch images into the block while blocks are small.

    Amortizes per-grid-step overhead and restores sublane density when C is
    small (e.g. C=4 f32 uses only 4/8 sublanes per vreg)."""
    target_block = 1 << 20                         # ~1 MiB per input block
    tile_b = 1
    for cand in range(1, b + 1):
        if b % cand:
            continue
        if 4 * 2 * cand * c * tile_hw * itemsize > work_budget:
            break
        tile_b = cand
        if cand * c * tile_hw * itemsize >= target_block:
            break
    return tile_b


def contrastive_loss(student_1, student_2, teacher_1, teacher_2):
    B, C, H, W = student_1.shape
    hw = H * W
    n_total = B * hw
    itemsize = jnp.dtype(student_1.dtype).itemsize

    work_budget, vmem_limit = _vmem_plan()
    tile_hw = _pick_tile_hw(hw, C, itemsize, work_budget)
    tile_b = _pick_tile_b(B, C, tile_hw, itemsize, work_budget)

    hw_padded = pl.cdiv(hw, tile_hw) * tile_hw
    n_hw_tiles = hw_padded // tile_hw
    n_b_tiles = B // tile_b

    # v7x dual-TC: ensure the parallel portion of the grid has >= 2 units even
    # when the batch axis alone cannot provide them.
    hw_outer = 2 if (n_b_tiles < 2 and n_hw_tiles >= 2 and n_hw_tiles % 2 == 0) else 1
    hw_inner = n_hw_tiles // hw_outer

    # Free reshape (collapses contiguous trailing dims) — no transpose, no
    # extra HBM round trip.  Inputs stay in their original dtype (bf16 OK).
    s1, s2, t1, t2 = (a.reshape(B, C, hw)
                      for a in (student_1, student_2, teacher_1, teacher_2))
    pad = hw_padded - hw
    if pad:
        # Padded pixels contribute cos = 0 (dot = 0, eps-clamped denom); the
        # final mean divides by the true pixel count n_total.
        s1, s2, t1, t2 = (jnp.pad(a, ((0, 0), (0, 0), (0, pad)))
                          for a in (s1, s2, t1, t2))

    grid = (n_b_tiles, hw_outer, hw_inner)

    # TODO(synk): if a profile shows the 4-way strided DMA fan-in still exposed,
    # add pipeline_mode=pl.Buffered(3) on the input specs and sweep 2 vs 3.
    in_spec = pl.BlockSpec((tile_b, C, tile_hw),
                           lambda b, ho, hi: (b, 0, ho * hw_inner + hi))
    # One (tile_b, 1, tile_hw) accumulator block per (batch-block, hw_outer)
    # pair, laid out along the leading output dim; resident across hi.
    out_spec = pl.BlockSpec((tile_b, 1, tile_hw),
                            lambda b, ho, hi: (b * hw_outer + ho, 0, 0))

    cost = pl.CostEstimate(
        flops=int(B * hw_padded * (12 * C + 14)),
        transcendentals=int(4 * B * hw_padded),            # 2 rsqrt / pixel / pair
        bytes_accessed=int(4 * B * C * hw_padded * itemsize
                           + 2 * B * hw_outer * tile_hw * 4),
    )

    partial = pl.pallas_call(
        _contrastive_kernel,
        out_shape=jax.ShapeDtypeStruct((B * hw_outer, 1, tile_hw), jnp.float32),
        grid_spec=pltpu.PrefetchScalarGridSpec(
            num_scalar_prefetch=0,
            grid=grid,
            in_specs=[in_spec, in_spec, in_spec, in_spec],
            out_specs=out_spec,
        ),
        compiler_params=pltpu.CompilerParams(
            dimension_semantics=("parallel", "parallel", "arbitrary"),
            vmem_limit_bytes=int(vmem_limit)),
        cost_estimate=cost,
    )(s1, s2, t1, t2)

    # partial holds per-lane sums of (cos1 + cos2).  The tiny scalar reduction
    # and affine map run in XLA:
    #   loss = 0.5*(mean(1-cos1) + mean(1-cos2)) = 1 - 0.5*(sum cos1 + sum cos2)/N
    total = jnp.sum(partial)
    return 1.0 - 0.5 * total / n_total


def _reference_loss(s1, s2, t1, t2):
    def norm_last(x):
        B, C, H, W = x.shape
        x = jnp.transpose(x.reshape(B, C, H * W), (0, 2, 1)).astype(jnp.float32)
        nrm = jnp.sqrt(jnp.sum(x * x, axis=-1, keepdims=True))
        return x / jnp.maximum(nrm, 1e-12)

    s1n, s2n, t1n, t2n = map(norm_last, (s1, s2, t1, t2))
    cos1 = jnp.sum(s1n * t1n, axis=-1)
    cos2 = jnp.sum(s2n * t2n, axis=-1)
    return 0.5 * ((1.0 - cos1).mean() + (1.0 - cos2).mean())


if __name__ == "__main__":
    key = jax.random.PRNGKey(0)
    k1, k2, k3, k4 = jax.random.split(key, 4)
    shape = (2, 4, 16, 16)  # (B, C, H, W)
    student_1 = jax.random.normal(k1, shape, dtype=jnp.float32)
    student_2 = jax.random.normal(k2, shape, dtype=jnp.float32)
    teacher_1 = jax.random.normal(k3, shape, dtype=jnp.float32)
    teacher_2 = jax.random.normal(k4, shape, dtype=jnp.float32)

    loss = contrastive_loss(student_1, student_2, teacher_1, teacher_2)
    loss = jax.block_until_ready(loss)

    ref = _reference_loss(student_1, student_2, teacher_1, teacher_2)
    assert jnp.allclose(loss, ref, atol=1e-5, rtol=1e-5), (loss, ref)

    print("KERNEL_OK")
</pallas_src>

<mosaic_0001>
module attributes {stable_mosaic.version = 11 : i64} {
  func.func @_contrastive_kernel(%arg0: i32, %arg1: i32, %arg2: i32, %arg3: memref<2x4x256xf32, #tpu.memory_space<vmem>>, %arg4: memref<2x4x256xf32, #tpu.memory_space<vmem>>, %arg5: memref<2x4x256xf32, #tpu.memory_space<vmem>>, %arg6: memref<2x4x256xf32, #tpu.memory_space<vmem>>, %arg7: memref<2x1x256xf32, #tpu.memory_space<vmem>>) attributes {dimension_semantics = [#tpu.dimension_semantics<parallel>, #tpu.dimension_semantics<parallel>, #tpu.dimension_semantics<arbitrary>], iteration_bounds = array<i64: 1, 1, 1>, scalar_prefetch = 0 : i64, scratch_operands = 0 : i64, tpu.core_type = #tpu.core_type<tc>, window_params = [{transform_indices = @transform_0, window_bounds = array<i64: 2, 4, 256>}, {transform_indices = @transform_1, window_bounds = array<i64: 2, 4, 256>}, {transform_indices = @transform_2, window_bounds = array<i64: 2, 4, 256>}, {transform_indices = @transform_3, window_bounds = array<i64: 2, 4, 256>}, {transform_indices = @transform_4, window_bounds = array<i64: 2, 1, 256>}]} {
    %c0_i32 = arith.constant 0 : i32
    %0 = arith.cmpi eq, %arg2, %c0_i32 : i32
    %1 = arith.extui %0 : i1 to i32
    %c0_i32_0 = arith.constant 0 : i32
    %2 = arith.cmpi ne, %1, %c0_i32_0 : i32
    scf.if %2 {
      %cst_27 = arith.constant 0.000000e+00 : f32
      %45 = vector.broadcast %cst_27 : f32 to vector<2x1x256xf32>
      %c0_28 = arith.constant 0 : index
      %c0_29 = arith.constant 0 : index
      %c0_30 = arith.constant 0 : index
      %46 = vector.load %arg7[%c0_28, %c0_29, %c0_30] : memref<2x1x256xf32, #tpu.memory_space<vmem>>, vector<2x1x256xf32>
      tpu.vector_store %arg7[%c0_28, %c0_29, %c0_30], %45 {strides = array<i32>} : memref<2x1x256xf32, #tpu.memory_space<vmem>>, vector<2x1x256xf32>,
    } else {
    }
    %c0 = arith.constant 0 : index
    %c0_1 = arith.constant 0 : index
    %c0_2 = arith.constant 0 : index
    %3 = vector.load %arg7[%c0, %c0_1, %c0_2] : memref<2x1x256xf32, #tpu.memory_space<vmem>>, vector<2x1x256xf32>
    %c0_3 = arith.constant 0 : index
    %c0_4 = arith.constant 0 : index
    %c0_5 = arith.constant 0 : index
    %4 = vector.load %arg3[%c0_3, %c0_4, %c0_5] : memref<2x4x256xf32, #tpu.memory_space<vmem>>, vector<2x4x256xf32>
    %c0_6 = arith.constant 0 : index
    %c0_7 = arith.constant 0 : index
    %c0_8 = arith.constant 0 : index
    %5 = vector.load %arg5[%c0_6, %c0_7, %c0_8] : memref<2x4x256xf32, #tpu.memory_space<vmem>>, vector<2x4x256xf32>
    %6 = arith.mulf %4, %5 : vector<2x4x256xf32>
    %cst = arith.constant dense<0.000000e+00> : vector<2x256xf32>
    %7 = vector.multi_reduction <add>, %6, %cst [1] : vector<2x4x256xf32> to vector<2x256xf32>
    %8 = vector.shape_cast %7 : vector<2x256xf32> to vector<2x1x256xf32>
    %9 = arith.mulf %4, %4 : vector<2x4x256xf32>
    %cst_9 = arith.constant dense<0.000000e+00> : vector<2x256xf32>
    %10 = vector.multi_reduction <add>, %9, %cst_9 [1] : vector<2x4x256xf32> to vector<2x256xf32>
    %11 = vector.shape_cast %10 : vector<2x256xf32> to vector<2x1x256xf32>
    %12 = arith.mulf %5, %5 : vector<2x4x256xf32>
    %cst_10 = arith.constant dense<0.000000e+00> : vector<2x256xf32>
    %13 = vector.multi_reduction <add>, %12, %cst_10 [1] : vector<2x4x256xf32> to vector<2x256xf32>
    %14 = vector.shape_cast %13 : vector<2x256xf32> to vector<2x1x256xf32>
    %cst_11 = arith.constant 1.000000e-24 : f32
    %15 = vector.broadcast %cst_11 : f32 to vector<2x1x256xf32>
    %16 = arith.maximumf %11, %15 : vector<2x1x256xf32>
    %17 = math.rsqrt %16 : vector<2x1x256xf32>
    %cst_12 = arith.constant 1.000000e-24 : f32
    %18 = vector.broadcast %cst_12 : f32 to vector<2x1x256xf32>
    %19 = arith.maximumf %14, %18 : vector<2x1x256xf32>
    %20 = math.rsqrt %19 : vector<2x1x256xf32>
    %21 = arith.mulf %8, %17 : vector<2x1x256xf32>
    %22 = arith.mulf %21, %20 : vector<2x1x256xf32>
    %c0_13 = arith.constant 0 : index
    %c0_14 = arith.constant 0 : index
    %c0_15 = arith.constant 0 : index
    %23 = vector.load %arg4[%c0_13, %c0_14, %c0_15] : memref<2x4x256xf32, #tpu.memory_space<vmem>>, vector<2x4x256xf32>
    %c0_16 = arith.constant 0 : index
    %c0_17 = arith.constant 0 : index
    %c0_18 = arith.constant 0 : index
    %24 = vector.load %arg6[%c0_16, %c0_17, %c0_18] : memref<2x4x256xf32, #tpu.memory_space<vmem>>, vector<2x4x256xf32>
    %25 = arith.mulf %23, %24 : vector<2x4x256xf32>
    %cst_19 = arith.constant dense<0.000000e+00> : vector<2x256xf32>
    %26 = vector.multi_reduction <add>, %25, %cst_19 [1] : vector<2x4x256xf32> to vector<2x256xf32>
    %27 = vector.shape_cast %26 : vector<2x256xf32> to vector<2x1x256xf32>
    %28 = arith.mulf %23, %23 : vector<2x4x256xf32>
    %cst_20 = arith.constant dense<0.000000e+00> : vector<2x256xf32>
    %29 = vector.multi_reduction <add>, %28, %cst_20 [1] : vector<2x4x256xf32> to vector<2x256xf32>
    %30 = vector.shape_cast %29 : vector<2x256xf32> to vector<2x1x256xf32>
    %31 = arith.mulf %24, %24 : vector<2x4x256xf32>
    %cst_21 = arith.constant dense<0.000000e+00> : vector<2x256xf32>
    %32 = vector.multi_reduction <add>, %31, %cst_21 [1] : vector<2x4x256xf32> to vector<2x256xf32>
    %33 = vector.shape_cast %32 : vector<2x256xf32> to vector<2x1x256xf32>
    %cst_22 = arith.constant 1.000000e-24 : f32
    %34 = vector.broadcast %cst_22 : f32 to vector<2x1x256xf32>
    %35 = arith.maximumf %30, %34 : vector<2x1x256xf32>
    %36 = math.rsqrt %35 : vector<2x1x256xf32>
    %cst_23 = arith.constant 1.000000e-24 : f32
    %37 = vector.broadcast %cst_23 : f32 to vector<2x1x256xf32>
    %38 = arith.maximumf %33, %37 : vector<2x1x256xf32>
    %39 = math.rsqrt %38 : vector<2x1x256xf32>
    %40 = arith.mulf %27, %36 : vector<2x1x256xf32>
    %41 = arith.mulf %40, %39 : vector<2x1x256xf32>
    %42 = arith.addf %22, %41 : vector<2x1x256xf32>
    %43 = arith.addf %3, %42 : vector<2x1x256xf32>
    %c0_24 = arith.constant 0 : index
    %c0_25 = arith.constant 0 : index
    %c0_26 = arith.constant 0 : index
    %44 = vector.load %arg7[%c0_24, %c0_25, %c0_26] : memref<2x1x256xf32, #tpu.memory_space<vmem>>, vector<2x1x256xf32>
    tpu.vector_store %arg7[%c0_24, %c0_25, %c0_26], %43 {strides = array<i32>} : memref<2x1x256xf32, #tpu.memory_space<vmem>>, vector<2x1x256xf32>,
    return
  }
  func.func @transform_0(%arg0: i32, %arg1: i32, %arg2: i32) -> (i32, i32, i32) {
    %c1_i32 = arith.constant 1 : i32
    %0 = arith.muli %arg1, %c1_i32 : i32
    %1 = arith.addi %0, %arg2 : i32
    %c0_i32 = arith.constant 0 : i32
    %c0_i32_0 = arith.constant 0 : i32
    return %arg0, %c0_i32, %1 : i32, i32, i32
  }
  func.func @transform_1(%arg0: i32, %arg1: i32, %arg2: i32) -> (i32, i32, i32) {
    %c1_i32 = arith.constant 1 : i32
    %0 = arith.muli %arg1, %c1_i32 : i32
    %1 = arith.addi %0, %arg2 : i32
    %c0_i32 = arith.constant 0 : i32
    %c0_i32_0 = arith.constant 0 : i32
    return %arg0, %c0_i32, %1 : i32, i32, i32
  }
  func.func @transform_2(%arg0: i32, %arg1: i32, %arg2: i32) -> (i32, i32, i32) {
    %c1_i32 = arith.constant 1 : i32
    %0 = arith.muli %arg1, %c1_i32 : i32
    %1 = arith.addi %0, %arg2 : i32
    %c0_i32 = arith.constant 0 : i32
    %c0_i32_0 = arith.constant 0 : i32
    return %arg0, %c0_i32, %1 : i32, i32, i32
  }
  func.func @transform_3(%arg0: i32, %arg1: i32, %arg2: i32) -> (i32, i32, i32) {
    %c1_i32 = arith.constant 1 : i32
    %0 = arith.muli %arg1, %c1_i32 : i32
    %1 = arith.addi %0, %arg2 : i32
    %c0_i32 = arith.constant 0 : i32
    %c0_i32_0 = arith.constant 0 : i32
    return %arg0, %c0_i32, %1 : i32, i32, i32
  }
  func.func @transform_4(%arg0: i32, %arg1: i32, %arg2: i32) -> (i32, i32, i32) {
    %c1_i32 = arith.constant 1 : i32
    %0 = arith.muli %arg0, %c1_i32 : i32
    %1 = arith.addi %0, %arg1 : i32
    %c0_i32 = arith.constant 0 : i32
    %c0_i32_0 = arith.constant 0 : i32
    %c0_i32_1 = arith.constant 0 : i32
    return %1, %c0_i32, %c0_i32_0 : i32, i32, i32
  }
}

</mosaic_0001>

<llo_original>
// kernel: tpu_custom_call.1
$region0: #{tpu_custom_call.1}
  #allocation0 [shape = 'u32[]', space=smem, size = 0x4, offset = 0x4, fixed_abs, tag = 'smem constant byte address 0x4 - core index']
  #allocation1 [shape = 'u32[144,128]{1,0:T(1,128)}', space=vmem, size = 0x12000, scoped, tag = 'internal scratch']
  %s0 = inlined_call_operand.hbm [shape: f32[2,4,256], index: 0, kind: input, shape index: {}]
  %s1 = inlined_call_operand.hbm [shape: f32[2,4,256], index: 1, kind: input, shape index: {}]
  %s2 = inlined_call_operand.hbm [shape: f32[2,4,256], index: 2, kind: input, shape index: {}]
  %s3 = inlined_call_operand.hbm [shape: f32[2,4,256], index: 3, kind: input, shape index: {}]
  %s4 = inlined_call_operand.hbm [shape: f32[2,1,256], index: 4, kind: output, shape index: {}]
  %s5 = sld [smem:[#allocation0]]
  $region46: #{tpu_custom_call.1} parent=0
    _
  %s7 = ssub.s32 1, %s5
  %s8 = scalar_select 0, %s7, %s5
  $region1: #{tpu_custom_call.1} parent=0
    #allocation2 [shape = 'u8[8192]{0}', space=vmem, size = 0x2000, scoped, tag = 'input window, operand 0, single buffered']
    #allocation3 [shape = 's32[1]{0}', space=sflag, size = 0x4, scoped, tag = 'scoped memory for tpu_custom_call.1']
    #allocation4 [shape = 's32[1]{0}', space=sflag, size = 0x4, scoped, tag = 'scoped memory for tpu_custom_call.1']
    #allocation5 [shape = 'u8[8192]{0}', space=vmem, size = 0x2000, scoped, tag = 'input window, operand 1, single buffered']
    #allocation6 [shape = 's32[1]{0}', space=sflag, size = 0x4, scoped, tag = 'scoped memory for tpu_custom_call.1']
    #allocation7 [shape = 'u8[8192]{0}', space=vmem, size = 0x2000, scoped, tag = 'input window, operand 2, single buffered']
    #allocation8 [shape = 'u8[8192]{0}', space=vmem, size = 0x2000, scoped, tag = 'input window, operand 3, single buffered']
    #allocation9 [shape = 's32[1]{0}', space=sflag, size = 0x4, scoped, tag = 'scoped memory for tpu_custom_call.1']
    #allocation10 [shape = 'u8[2048]{0}', space=vmem, size = 0x800, scoped, tag = 'output window, operand 0, single buffered']
    %9 = vsyncpa [#allocation3], 0
    %10 = vsyncpa [#allocation6], 0
    %11 = vsyncpa [#allocation9], 0
    %12 = vsyncpa [#allocation4], 0
    // Predicated region
    $region2: #{tpu_custom_call.1} parent=1 // pred_check
      _
    $region3: #{tpu_custom_call.1} parent=1 // pred_check_branch
      %14 = sbr.rel (0) target = $region5
    $region4: #{tpu_custom_call.1} parent=1 // pred_region
      %s15 = sadd.s32 0, 0
      %s16 = smul.u32 2, %s15
      %s18 = ssub.s32 256, 256
      %19 = vsyncadd [#allocation3], %s18
      %s20 = smul.addr %s16, 64
      %s21 = scalar_lea.hbm %s0, %s20
      %s22 = sshll.u32 [#allocation2], 4
      %s23 = int_to_ptr.vmem [resolvable:$true] %s22
      %28 = dma.hbm_to_vmem [thread:$0]  %s21, 256, %s23, [#allocation3], 128, 128, 8
    $region5: #{tpu_custom_call.1} parent=1 // pred_fallthru
      _
    // Predicated region
    $region6: #{tpu_custom_call.1} parent=1 // pred_check
      _
    $region7: #{tpu_custom_call.1} parent=1 // pred_check_branch
      %30 = sbr.rel (0) target = $region9
    $region8: #{tpu_custom_call.1} parent=1 // pred_region
      %s31 = sadd.s32 0, 0
      %s32 = smul.u32 2, %s31
      %s34 = ssub.s32 256, 256
      %35 = vsyncadd [#allocation6], %s34
      %s36 = smul.addr %s32, 64
      %s37 = scalar_lea.hbm %s1, %s36
      %s38 = sshll.u32 [#allocation5], 4
      %s39 = int_to_ptr.vmem [resolvable:$true] %s38
      %44 = dma.hbm_to_vmem [thread:$0]  %s37, 256, %s39, [#allocation6], 128, 128, 8
    $region9: #{tpu_custom_call.1} parent=1 // pred_fallthru
      _
    // Predicated region
    $region10: #{tpu_custom_call.1} parent=1 // pred_check
      _
    $region11: #{tpu_custom_call.1} parent=1 // pred_check_branch
      %46 = sbr.rel (0) target = $region13
    $region12: #{tpu_custom_call.1} parent=1 // pred_region
      %s47 = sadd.s32 0, 0
      %s48 = smul.u32 2, %s47
      %s50 = ssub.s32 256, 256
      %51 = vsyncadd [#allocation6], %s50
      %s52 = smul.addr %s48, 64
      %s53 = scalar_lea.hbm %s2, %s52
      %s54 = sshll.u32 [#allocation7], 4
      %s55 = int_to_ptr.vmem [resolvable:$true] %s54
      %60 = dma.hbm_to_vmem [thread:$0]  %s53, 256, %s55, [#allocation6], 128, 128, 8
    $region13: #{tpu_custom_call.1} parent=1 // pred_fallthru
      _
    // Predicated region
    $region14: #{tpu_custom_call.1} parent=1 // pred_check
      _
    $region15: #{tpu_custom_call.1} parent=1 // pred_check_branch
      %62 = sbr.rel (0) target = $region17
    $region16: #{tpu_custom_call.1} parent=1 // pred_region
      %s63 = sadd.s32 0, 0
      %s64 = smul.u32 2, %s63
      %s66 = ssub.s32 256, 256
      %67 = vsyncadd [#allocation9], %s66
      %s68 = smul.addr %s64, 64
      %s69 = scalar_lea.hbm %s3, %s68
      %s70 = sshll.u32 [#allocation8], 4
      %s71 = int_to_ptr.vmem [resolvable:$true] %s70
      %76 = dma.hbm_to_vmem [thread:$0]  %s69, 256, %s71, [#allocation9], 128, 128, 8
    $region17: #{tpu_custom_call.1} parent=1 // pred_fallthru
      _
    // Predicated region
    $region18: #{tpu_custom_call.1} parent=1 // pred_check
      _
    $region19: #{tpu_custom_call.1} parent=1 // pred_check_branch
      %78 = sbr.rel (0) target = $region21
    $region20: #{tpu_custom_call.1} parent=1 // pred_region
      %79 = dma.done [#allocation3], 256
    $region21: #{tpu_custom_call.1} parent=1 // pred_fallthru
      _
    // Predicated region
    $region22: #{tpu_custom_call.1} parent=1 // pred_check
      _
    $region23: #{tpu_custom_call.1} parent=1 // pred_check_branch
      %81 = sbr.rel (0) target = $region25
    $region24: #{tpu_custom_call.1} parent=1 // pred_region
      %82 = dma.done [#allocation6], 256
    $region25: #{tpu_custom_call.1} parent=1 // pred_fallthru
      _
    // Predicated region
    $region26: #{tpu_custom_call.1} parent=1 // pred_check
      _
    $region27: #{tpu_custom_call.1} parent=1 // pred_check_branch
      %84 = sbr.rel (0) target = $region29
    $region28: #{tpu_custom_call.1} parent=1 // pred_region
      %85 = dma.done [#allocation6], 256
    $region29: #{tpu_custom_call.1} parent=1 // pred_fallthru
      _
    // Predicated region
    $region30: #{tpu_custom_call.1} parent=1 // pred_check
      _
    $region31: #{tpu_custom_call.1} parent=1 // pred_check_branch
      %87 = sbr.rel (0) target = $region33
    $region32: #{tpu_custom_call.1} parent=1 // pred_region
      %88 = dma.done [#allocation9], 256
    $region33: #{tpu_custom_call.1} parent=1 // pred_fallthru
      _
    %s89 = sadd.s32 0, 0
    %s90 = smul.u32 2, %s89
    %s91 = sadd.s32 0, 0
    %s92 = smul.u32 2, %s91
    %s93 = sadd.s32 0, 0
    %s94 = smul.u32 2, %s93
    %s95 = sadd.s32 0, 0
    %s96 = smul.u32 2, %s95
    %s97 = sadd.s32 0, 0
    %s98 = smul.u32 2, %s97
    %p99 = scmp.eq.s32.totalorder 0, 0
    // Predicated region
    $region34: #{tpu_custom_call.1} parent=1 // pred_check
      %p100 = pneg %p99
    $region35: #{tpu_custom_call.1} parent=1 // pred_check_branch
      %102 = sbr.rel (%p100) target = $region37
    $region36: #{tpu_custom_call.1} parent=1 // pred_region
      %v103 = vlaneseq
      %vm104 = vcmp.ge.s32.totalorder %v103, 0
      %vm105 = vcmp.lt.s32.totalorder %v103, 256
      %vm106 = vmand %vm104, %vm105
      %107 = vst.msk [vmem:[#allocation10] sm:$0x3] %vm106, 0.0
      %108 = vst.msk [vmem:[#allocation10 + $0x2] sm:$0x3] %vm106, 0.0
    $region37: #{tpu_custom_call.1} parent=1 // pred_fallthru
      _
    %v109 = vld [vmem:[#allocation10] sm:$0x3]
    %v110 = vld [vmem:[#allocation10 + $0x2] sm:$0x3]
    %v111 = vld [vmem:[#allocation2] sm:$0xff]
    %v112 = vld [vmem:[#allocation2 + $0x8] sm:$0xff]
    %v113 = vld [vmem:[#allocation7] sm:$0xff]
    %v114 = vld [vmem:[#allocation7 + $0x8] sm:$0xff]
    %v115 = vmul.f32 %v111, %v113
    %v116 = vmul.f32 %v112, %v114
    %v119 = vcombine.high %v115, %v115
    %v120 = vcombine.high %v116, %v116
    %vm123 = vcmask 1043456
    %v124 = vsel %vm123, %v115, 0.0
    %v125 = vrot.slane %v124, 4
    %v126 = vadd.f32 %v124, %v125
    %v127 = vrot.slane %v126, 2
    %v128 = vadd.f32 %v126, %v127
    %v129 = vrot.slane %v128, 1
    %v130 = vadd.f32 %v128, %v129
    %v131 = vsel %vm123, %v119, 0.0
    %v132 = vrot.slane %v131, 4
    %v133 = vadd.f32 %v131, %v132
    %v134 = vrot.slane %v133, 2
    %v135 = vadd.f32 %v133, %v134
    %v136 = vrot.slane %v135, 1
    %v137 = vadd.f32 %v135, %v136
    %v138 = vsel %vm123, %v116, 0.0
    %v139 = vrot.slane %v138, 4
    %v140 = vadd.f32 %v138, %v139
    %v141 = vrot.slane %v140, 2
    %v142 = vadd.f32 %v140, %v141
    %v143 = vrot.slane %v142, 1
    %v144 = vadd.f32 %v142, %v143
    %v145 = vsel %vm123, %v120, 0.0
    %v146 = vrot.slane %v145, 4
    %v147 = vadd.f32 %v145, %v146
    %v148 = vrot.slane %v147, 2
    %v149 = vadd.f32 %v147, %v148
    %v150 = vrot.slane %v149, 1
    %v151 = vadd.f32 %v149, %v150
    %v152 = vmul.f32 %v111, %v111
    %v153 = vmul.f32 %v112, %v112
    %v156 = vcombine.high %v152, %v152
    %v157 = vcombine.high %v153, %v153
    %v160 = vsel %vm123, %v152, 0.0
    %v161 = vrot.slane %v160, 4
    %v162 = vadd.f32 %v160, %v161
    %v163 = vrot.slane %v162, 2
    %v164 = vadd.f32 %v162, %v163
    %v165 = vrot.slane %v164, 1
    %v166 = vadd.f32 %v164, %v165
    %v167 = vsel %vm123, %v156, 0.0
    %v168 = vrot.slane %v167, 4
    %v169 = vadd.f32 %v167, %v168
    %v170 = vrot.slane %v169, 2
    %v171 = vadd.f32 %v169, %v170
    %v172 = vrot.slane %v171, 1
    %v173 = vadd.f32 %v171, %v172
    %v174 = vsel %vm123, %v153, 0.0
    %v175 = vrot.slane %v174, 4
    %v176 = vadd.f32 %v174, %v175
    %v177 = vrot.slane %v176, 2
    %v178 = vadd.f32 %v176, %v177
    %v179 = vrot.slane %v178, 1
    %v180 = vadd.f32 %v178, %v179
    %v181 = vsel %vm123, %v157, 0.0
    %v182 = vrot.slane %v181, 4
    %v183 = vadd.f32 %v181, %v182
    %v184 = vrot.slane %v183, 2
    %v185 = vadd.f32 %v183, %v184
    %v186 = vrot.slane %v185, 1
    %v187 = vadd.f32 %v185, %v186
    %v188 = vmul.f32 %v113, %v113
    %v189 = vmul.f32 %v114, %v114
    %v192 = vcombine.high %v188, %v188
    %v193 = vcombine.high %v189, %v189
    %v196 = vsel %vm123, %v188, 0.0
    %v197 = vrot.slane %v196, 4
    %v198 = vadd.f32 %v196, %v197
    %v199 = vrot.slane %v198, 2
    %v200 = vadd.f32 %v198, %v199
    %v201 = vrot.slane %v200, 1
    %v202 = vadd.f32 %v200, %v201
    %v203 = vsel %vm123, %v192, 0.0
    %v204 = vrot.slane %v203, 4
    %v205 = vadd.f32 %v203, %v204
    %v206 = vrot.slane %v205, 2
    %v207 = vadd.f32 %v205, %v206
    %v208 = vrot.slane %v207, 1
    %v209 = vadd.f32 %v207, %v208
    %v210 = vsel %vm123, %v189, 0.0
    %v211 = vrot.slane %v210, 4
    %v212 = vadd.f32 %v210, %v211
    %v213 = vrot.slane %v212, 2
    %v214 = vadd.f32 %v212, %v213
    %v215 = vrot.slane %v214, 1
    %v216 = vadd.f32 %v214, %v215
    %v217 = vsel %vm123, %v193, 0.0
    %v218 = vrot.slane %v217, 4
    %v219 = vadd.f32 %v217, %v218
    %v220 = vrot.slane %v219, 2
    %v221 = vadd.f32 %v219, %v220
    %v222 = vrot.slane %v221, 1
    %v223 = vadd.f32 %v221, %v222
    %v224 = vmax.f32 %v166, 1e-24
    %v225 = vmax.f32 %v173, 1e-24
    %v226 = vmax.f32 %v180, 1e-24
    %v227 = vmax.f32 %v187, 1e-24
    %v228 = vrsqrt.pop %v224
    %v229 = vrsqrt.pop %v225
    %v230 = vrsqrt.pop %v226
    %v231 = vrsqrt.pop %v227
    %v232 = vmax.f32 %v202, 1e-24
    %v233 = vmax.f32 %v209, 1e-24
    %v234 = vmax.f32 %v216, 1e-24
    %v235 = vmax.f32 %v223, 1e-24
    %v236 = vrsqrt.pop %v232
    %v237 = vrsqrt.pop %v233
    %v238 = vrsqrt.pop %v234
    %v239 = vrsqrt.pop %v235
    %v240 = vmul.f32 %v130, %v228
    %v241 = vmul.f32 %v137, %v229
    %v242 = vmul.f32 %v144, %v230
    %v243 = vmul.f32 %v151, %v231
    %v244 = vmul.f32 %v240, %v236
    %v245 = vmul.f32 %v241, %v237
    %v246 = vmul.f32 %v242, %v238
    %v247 = vmul.f32 %v243, %v239
    %v248 = vld [vmem:[#allocation5] sm:$0xff]
    %v249 = vld [vmem:[#allocation5 + $0x8] sm:$0xff]
    %v250 = vld [vmem:[#allocation8] sm:$0xff]
    %v251 = vld [vmem:[#allocation8 + $0x8] sm:$0xff]
    %v252 = vmul.f32 %v248, %v250
    %v253 = vmul.f32 %v249, %v251
    %v256 = vcombine.high %v252, %v252
    %v257 = vcombine.high %v253, %v253
    %v260 = vsel %vm123, %v252, 0.0
    %v261 = vrot.slane %v260, 4
    %v262 = vadd.f32 %v260, %v261
    %v263 = vrot.slane %v262, 2
    %v264 = vadd.f32 %v262, %v263
    %v265 = vrot.slane %v264, 1
    %v266 = vadd.f32 %v264, %v265
    %v267 = vsel %vm123, %v256, 0.0
    %v268 = vrot.slane %v267, 4
    %v269 = vadd.f32 %v267, %v268
    %v270 = vrot.slane %v269, 2
    %v271 = vadd.f32 %v269, %v270
    %v272 = vrot.slane %v271, 1
    %v273 = vadd.f32 %v271, %v272
    %v274 = vsel %vm123, %v253, 0.0
    %v275 = vrot.slane %v274, 4
    %v276 = vadd.f32 %v274, %v275
    %v277 = vrot.slane %v276, 2
    %v278 = vadd.f32 %v276, %v277
    %v279 = vrot.slane %v278, 1
    %v280 = vadd.f32 %v278, %v279
    %v281 = vsel %vm123, %v257, 0.0
    %v282 = vrot.slane %v281, 4
    %v283 = vadd.f32 %v281, %v282
    %v284 = vrot.slane %v283, 2
    %v285 = vadd.f32 %v283, %v284
    %v286 = vrot.slane %v285, 1
    %v287 = vadd.f32 %v285, %v286
    %v288 = vmul.f32 %v248, %v248
    %v289 = vmul.f32 %v249, %v249
    %v292 = vcombine.high %v288, %v288
    %v293 = vcombine.high %v289, %v289
    %v296 = vsel %vm123, %v288, 0.0
    %v297 = vrot.slane %v296, 4
    %v298 = vadd.f32 %v296, %v297
    %v299 = vrot.slane %v298, 2
    %v300 = vadd.f32 %v298, %v299
    %v301 = vrot.slane %v300, 1
    %v302 = vadd.f32 %v300, %v301
    %v303 = vsel %vm123, %v292, 0.0
    %v304 = vrot.slane %v303, 4
    %v305 = vadd.f32 %v303, %v304
    %v306 = vrot.slane %v305, 2
    %v307 = vadd.f32 %v305, %v306
    %v308 = vrot.slane %v307, 1
    %v309 = vadd.f32 %v307, %v308
    %v310 = vsel %vm123, %v289, 0.0
    %v311 = vrot.slane %v310, 4
    %v312 = vadd.f32 %v310, %v311
    %v313 = vrot.slane %v312, 2
    %v314 = vadd.f32 %v312, %v313
    %v315 = vrot.slane %v314, 1
    %v316 = vadd.f32 %v314, %v315
    %v317 = vsel %vm123, %v293, 0.0
    %v318 = vrot.slane %v317, 4
    %v319 = vadd.f32 %v317, %v318
    %v320 = vrot.slane %v319, 2
    %v321 = vadd.f32 %v319, %v320
    %v322 = vrot.slane %v321, 1
    %v323 = vadd.f32 %v321, %v322
    %v324 = vmul.f32 %v250, %v250
    %v325 = vmul.f32 %v251, %v251
    %v328 = vcombine.high %v324, %v324
    %v329 = vcombine.high %v325, %v325
    %v332 = vsel %vm123, %v324, 0.0
    %v333 = vrot.slane %v332, 4
    %v334 = vadd.f32 %v332, %v333
    %v335 = vrot.slane %v334, 2
    %v336 = vadd.f32 %v334, %v335
    %v337 = vrot.slane %v336, 1
    %v338 = vadd.f32 %v336, %v337
    %v339 = vsel %vm123, %v328, 0.0
    %v340 = vrot.slane %v339, 4
    %v341 = vadd.f32 %v339, %v340
    %v342 = vrot.slane %v341, 2
    %v343 = vadd.f32 %v341, %v342
    %v344 = vrot.slane %v343, 1
    %v345 = vadd.f32 %v343, %v344
    %v346 = vsel %vm123, %v325, 0.0
    %v347 = vrot.slane %v346, 4
    %v348 = vadd.f32 %v346, %v347
    %v349 = vrot.slane %v348, 2
    %v350 = vadd.f32 %v348, %v349
    %v351 = vrot.slane %v350, 1
    %v352 = vadd.f32 %v350, %v351
    %v353 = vsel %vm123, %v329, 0.0
    %v354 = vrot.slane %v353, 4
    %v355 = vadd.f32 %v353, %v354
    %v356 = vrot.slane %v355, 2
    %v357 = vadd.f32 %v355, %v356
    %v358 = vrot.slane %v357, 1
    %v359 = vadd.f32 %v357, %v358
    %v360 = vmax.f32 %v302, 1e-24
    %v361 = vmax.f32 %v309, 1e-24
    %v362 = vmax.f32 %v316, 1e-24
    %v363 = vmax.f32 %v323, 1e-24
    %v364 = vrsqrt.pop %v360
    %v365 = vrsqrt.pop %v361
    %v366 = vrsqrt.pop %v362
    %v367 = vrsqrt.pop %v363
    %v368 = vmax.f32 %v338, 1e-24
    %v369 = vmax.f32 %v345, 1e-24
    %v370 = vmax.f32 %v352, 1e-24
    %v371 = vmax.f32 %v359, 1e-24
    %v372 = vrsqrt.pop %v368
    %v373 = vrsqrt.pop %v369
    %v374 = vrsqrt.pop %v370
    %v375 = vrsqrt.pop %v371
    %v376 = vmul.f32 %v266, %v364
    %v377 = vmul.f32 %v273, %v365
    %v378 = vmul.f32 %v280, %v366
    %v379 = vmul.f32 %v287, %v367
    %v380 = vmul.f32 %v376, %v372
    %v381 = vmul.f32 %v377, %v373
    %v382 = vmul.f32 %v378, %v374
    %v383 = vmul.f32 %v379, %v375
    %v384 = vadd.f32 %v244, %v380
    %v385 = vadd.f32 %v245, %v381
    %v386 = vadd.f32 %v246, %v382
    %v387 = vadd.f32 %v247, %v383
    %v392 = vcombine.low %v384, %v385
    %v394 = vunpack.c.l.s4 1966171168
    %v395 = vunpack.c.0.s8 %v394
    %v396 = vlaneseq
    %v397 = vshrl.u32 %v396, 7
    %v398 = vsub.s32 %v395, %v397
    %v399 = vrot.slane %v392, %v398
    %v401 = vunpack.c.l.s4 1966171168
    %v402 = vunpack.c.0.s8 %v401
    %v403 = vlaneseq
    %v404 = vshrl.u32 %v403, 7
    %v405 = vsub.s32 %v402, %v404
    %v406 = vrot.slane %v399, %v405
    %v407 = vcombine.low %v386, %v387
    %v409 = vunpack.c.l.s4 1966171168
    %v410 = vunpack.c.0.s8 %v409
    %v411 = vlaneseq
    %v412 = vshrl.u32 %v411, 7
    %v413 = vsub.s32 %v410, %v412
    %v414 = vrot.slane %v407, %v413
    %v416 = vunpack.c.l.s4 1966171168
    %v417 = vunpack.c.0.s8 %v416
    %v418 = vlaneseq
    %v419 = vshrl.u32 %v418, 7
    %v420 = vsub.s32 %v417, %v419
    %v421 = vrot.slane %v414, %v420
    %v424 = vadd.f32 %v109, %v406
    %v425 = vadd.f32 %v110, %v421
    %v426 = vlaneseq
    %vm427 = vcmp.ge.s32.totalorder %v426, 0
    %vm428 = vcmp.lt.s32.totalorder %v426, 256
    %vm429 = vmand %vm427, %vm428
    %430 = vst.msk [vmem:[#allocation10] sm:$0x3] %vm429, %v424
    %431 = vst.msk [vmem:[#allocation10 + $0x2] sm:$0x3] %vm429, %v425
    // Predicated region
    $region38: #{tpu_custom_call.1} parent=1 // pred_check
      _
    $region39: #{tpu_custom_call.1} parent=1 // pred_check_branch
      %433 = sbr.rel (0) target = $region41
    $region40: #{tpu_custom_call.1} parent=1 // pred_region
      %s434 = sadd.s32 0, 0
      %s435 = smul.u32 2, %s434
      %s437 = ssub.s32 64, 64
      %438 = vsyncadd [#allocation4], %s437
      %s439 = smul.addr %s435, 2
      %s440 = smul.addr %s439, 16
      %s441 = scalar_lea.hbm %s4, %s440
      %s442 = sshll.u32 [#allocation10], 4
      %s443 = int_to_ptr.vmem [resolvable:$true] %s442
      %448 = dma.vmem_to_hbm [thread:$0]  %s443, 64, %s441, [#allocation4], 32, 32, 2
    $region41: #{tpu_custom_call.1} parent=1 // pred_fallthru
      _
    // Predicated region
    $region42: #{tpu_custom_call.1} parent=1 // pred_check
      _
    $region43: #{tpu_custom_call.1} parent=1 // pred_check_branch
      %450 = sbr.rel (0) target = $region45
    $region44: #{tpu_custom_call.1} parent=1 // pred_region
      %451 = dma.done [#allocation4], 64
    $region45: #{tpu_custom_call.1} parent=1 // pred_fallthru
      _
    %452 = vsyncpa [#allocation3], 1
    %453 = vsyncpa [#allocation6], 1
    %454 = vsyncpa [#allocation9], 1
    %455 = vsyncpa [#allocation4], 1

</llo_original>
